<compile_context>
chip_gen: v7x
topology: tpu7x:2x2x1
jax: 0.10.0
libtpu: 0.0.40
codegen_flags: <defaults>
</compile_context>

<pallas_src>
import functools

import jax
import jax.numpy as jnp
from jax.experimental import pallas as pl
from jax.experimental.pallas import tpu as pltpu

LANES = 128
SUBLANES = 8
VREG_ELEMS = SUBLANES * LANES          # 1024 elements == one f32 vreg
NCORES = 2                              # leading "parallel" axis (v7x megacore)
MAX_BLOCK_BYTES = 4 * 1024 * 1024       # ~4 MiB per input block per grid step


def _vreg_fold(block):
    """(tile_rows, 128) f32 -> (8, 128): pure-VPU vreg adds, no cross-lane work."""
    return block.reshape(block.shape[0] // SUBLANES, SUBLANES, LANES).sum(axis=0)


def _sse_kernel(x_ref, y_ref, o_ref, acc_ref, *, nblocks, valid_rows_last, ragged):
    c = pl.program_id(0)            # which half of the two-way core split
    i = pl.program_id(1)            # step within this core's block list
    blk = NCORES * i + c            # logical block handled this step (pre-clamp)
    last_blk = nblocks - 1

    @pl.when(i == 0)
    def _():
        acc_ref[...] = jnp.zeros_like(acc_ref)

    # Stream in native dtype, compute/accumulate in f32.
    d = x_ref[...].astype(jnp.float32) - y_ref[...].astype(jnp.float32)
    sq = d * d

    if ragged:
        # Fast path for every full block; the row mask runs on exactly one step
        # and compares against a compile-time constant bound.
        @pl.when(blk < last_blk)
        def _():
            acc_ref[...] += _vreg_fold(sq)

        @pl.when(blk == last_blk)
        def _():
            row_id = jax.lax.broadcasted_iota(jnp.int32, sq.shape, 0)
            acc_ref[...] += _vreg_fold(jnp.where(row_id < valid_rows_last, sq, 0.0))
    elif nblocks % NCORES != 0:
        # Odd block count: one core has a clamped duplicate ("phantom") step
        # whose contribution must be skipped.
        @pl.when(blk <= last_blk)
        def _():
            acc_ref[...] += _vreg_fold(sq)
    else:
        acc_ref[...] += _vreg_fold(sq)

    @pl.when(i == pl.num_programs(1) - 1)
    def _():
        # Emit the per-core (8,128) partial; the cross-lane reduce, tail add,
        # /n and sqrt happen in the (tiny) jnp epilogue.
        o_ref[...] = acc_ref[...].reshape(o_ref.shape)


def _sse_pallas(x2, y2, tile_rows, nblocks, valid_rows_last, ragged):
    """Sum of squared differences over a (rows, 128) pair, as (2, 8, 128) partials."""
    if nblocks % NCORES != 0:
        def in_map(c, i):
            return (jnp.minimum(NCORES * i + c, nblocks - 1), 0)
    else:
        def in_map(c, i):
            return (NCORES * i + c, 0)

    kernel = functools.partial(
        _sse_kernel,
        nblocks=nblocks,
        valid_rows_last=valid_rows_last,
        ragged=ragged,
    )
    inner = (nblocks + NCORES - 1) // NCORES

    return pl.pallas_call(
        kernel,
        out_shape=jax.ShapeDtypeStruct((NCORES, SUBLANES, LANES), jnp.float32),
        grid_spec=pltpu.PrefetchScalarGridSpec(
            num_scalar_prefetch=0,
            grid=(NCORES, inner),
            in_specs=[
                pl.BlockSpec((tile_rows, LANES), in_map),
                pl.BlockSpec((tile_rows, LANES), in_map),
            ],
            out_specs=pl.BlockSpec((1, SUBLANES, LANES), lambda c, i: (c, 0, 0)),
            scratch_shapes=[pltpu.VMEM((SUBLANES, LANES), jnp.float32)],
        ),
        compiler_params=pltpu.CompilerParams(
            dimension_semantics=("parallel", "arbitrary"),
            vmem_limit_bytes=32 * 1024 * 1024,
        ),
    )(x2, y2)


def rmse_loss(inputs, targets):
    """Pallas equivalent of torch.sqrt(nn.MSELoss()(inputs, targets))."""
    assert inputs.shape == targets.shape, "RMSELoss expects matching shapes"
    n_total = int(inputs.size)
    if n_total == 0:
        return jnp.float32(jnp.nan)   # torch's MSELoss on empty tensors -> nan

    x = inputs.reshape(-1)            # free (contiguous) reshape
    y = targets.reshape(-1)

    # Kernel consumes the vreg-aligned (multiple of 1024) prefix; the <=1023
    # element tail is folded in below.  No full-array jnp.pad copies.
    n_main = (n_total // VREG_ELEMS) * VREG_ELEMS
    rows = n_main // LANES            # multiple of 8 by construction

    sse = jnp.float32(0.0)
    if rows > 0:
        if n_main == n_total:
            xm, ym = x, y             # zero-copy path (common case)
        else:
            xm = jax.lax.slice(x, (0,), (n_main,))
            ym = jax.lax.slice(y, (0,), (n_main,))
        xm = xm.reshape(rows, LANES)
        ym = ym.reshape(rows, LANES)

        # ~4 MiB per input block regardless of dtype (bf16 -> 2x the rows).
        itemsize = max(inputs.dtype.itemsize, targets.dtype.itemsize)
        cap = MAX_BLOCK_BYTES // (LANES * itemsize)
        cap = max(SUBLANES, (cap // SUBLANES) * SUBLANES)
        tile_rows = min(cap, rows)
        nblocks = (rows + tile_rows - 1) // tile_rows
        ragged = (rows % tile_rows) != 0
        valid_rows_last = rows - (nblocks - 1) * tile_rows

        partials = _sse_pallas(xm, ym, tile_rows, nblocks, valid_rows_last, ragged)
        sse = sse + jnp.sum(partials)

    if n_main != n_total:
        xt = jax.lax.slice(x, (n_main,), (n_total,)).astype(jnp.float32)
        yt = jax.lax.slice(y, (n_main,), (n_total,)).astype(jnp.float32)
        sse = sse + jnp.sum((xt - yt) * (xt - yt))

    return jnp.sqrt(sse / jnp.float32(n_total))


if __name__ == "__main__":
    key = jax.random.PRNGKey(0)
    k1, k2, k3, k4, k5, k6, k7, k8 = jax.random.split(key, 8)

    # 1) Small vreg-aligned shape (batch=2, channels=4, 16x16 spatial).
    a = jax.random.normal(k1, (2, 4, 16, 16), dtype=jnp.float32)
    b = jax.random.normal(k2, (2, 4, 16, 16), dtype=jnp.float32)
    got = jax.block_until_ready(rmse_loss(a, b))
    ref = jnp.sqrt(jnp.mean((a - b) ** 2))
    assert jnp.allclose(got, ref, rtol=1e-5, atol=1e-6), (got, ref)

    # 2) Lane-unaligned size: exercises the jnp tail fold (no pad copy).
    a2 = jax.random.normal(k3, (300, 1000), dtype=jnp.float32)
    b2 = jax.random.normal(k4, (300, 1000), dtype=jnp.float32)
    got2 = jax.block_until_ready(rmse_loss(a2, b2))
    ref2 = jnp.sqrt(jnp.mean((a2 - b2) ** 2))
    assert jnp.allclose(got2, ref2, rtol=1e-5, atol=1e-6), (got2, ref2)

    # 3) Multi-block + ragged last block + odd block count (phantom step) +
    #    two-way core split all exercised.
    a3 = jax.random.normal(k5, (3000, 1000), dtype=jnp.float32)
    b3 = jax.random.normal(k6, (3000, 1000), dtype=jnp.float32)
    got3 = jax.block_until_ready(rmse_loss(a3, b3))
    ref3 = jnp.sqrt(jnp.mean((a3 - b3) ** 2))
    assert jnp.allclose(got3, ref3, rtol=2e-4, atol=1e-6), (got3, ref3)

    # 4) bf16 inputs stream in native dtype; accumulation stays f32.
    a4 = jax.random.normal(k7, (128, 257), dtype=jnp.bfloat16)
    b4 = jax.random.normal(k8, (128, 257), dtype=jnp.bfloat16)
    got4 = jax.block_until_ready(rmse_loss(a4, b4))
    ref4 = jnp.sqrt(jnp.mean(
        (a4.astype(jnp.float32) - b4.astype(jnp.float32)) ** 2))
    assert jnp.allclose(got4, ref4, rtol=1e-4, atol=1e-6), (got4, ref4)

    print("KERNEL_OK")
</pallas_src>

<mosaic_0001>
module attributes {stable_mosaic.version = 11 : i64} {
  func.func @_sse_kernel(%arg0: i32, %arg1: i32, %arg2: memref<16x128xf32, #tpu.memory_space<vmem>>, %arg3: memref<16x128xf32, #tpu.memory_space<vmem>>, %arg4: memref<1x8x128xf32, #tpu.memory_space<vmem>>, %arg5: memref<8x128xf32, #tpu.memory_space<vmem>>) attributes {dimension_semantics = [#tpu.dimension_semantics<parallel>, #tpu.dimension_semantics<arbitrary>], iteration_bounds = array<i64: 2, 1>, scalar_prefetch = 0 : i64, scratch_operands = 1 : i64, tpu.core_type = #tpu.core_type<tc>, window_params = [{transform_indices = @transform_0, window_bounds = array<i64: 16, 128>}, {transform_indices = @transform_1, window_bounds = array<i64: 16, 128>}, {transform_indices = @transform_2, window_bounds = array<i64: 1, 8, 128>}]} {
    %c2_i32 = arith.constant 2 : i32
    %0 = arith.muli %c2_i32, %arg1 : i32
    %1 = arith.addi %0, %arg0 : i32
    %c0_i32 = arith.constant 0 : i32
    %2 = arith.cmpi eq, %arg1, %c0_i32 : i32
    %3 = arith.extui %2 : i1 to i32
    %c0_i32_0 = arith.constant 0 : i32
    %4 = arith.cmpi ne, %3, %c0_i32_0 : i32
    scf.if %4 {
      %cst = arith.constant 0.000000e+00 : f32
      %15 = vector.broadcast %cst : f32 to vector<8x128xf32>
      %c0_8 = arith.constant 0 : index
      %c0_9 = arith.constant 0 : index
      %16 = vector.load %arg5[%c0_8, %c0_9] : memref<8x128xf32, #tpu.memory_space<vmem>>, vector<8x128xf32>
      tpu.vector_store %arg5[%c0_8, %c0_9], %15 {strides = array<i32>} : memref<8x128xf32, #tpu.memory_space<vmem>>, vector<8x128xf32>,
    } else {
    }
    %c0 = arith.constant 0 : index
    %c0_1 = arith.constant 0 : index
    %5 = vector.load %arg2[%c0, %c0_1] : memref<16x128xf32, #tpu.memory_space<vmem>>, vector<16x128xf32>
    %c0_2 = arith.constant 0 : index
    %c0_3 = arith.constant 0 : index
    %6 = vector.load %arg3[%c0_2, %c0_3] : memref<16x128xf32, #tpu.memory_space<vmem>>, vector<16x128xf32>
    %7 = arith.subf %5, %6 : vector<16x128xf32>
    %8 = arith.mulf %7, %7 : vector<16x128xf32>
    %c0_i32_4 = arith.constant 0 : i32
    %9 = arith.cmpi sle, %1, %c0_i32_4 : i32
    %10 = arith.extui %9 : i1 to i32
    %c0_i32_5 = arith.constant 0 : i32
    %11 = arith.cmpi ne, %10, %c0_i32_5 : i32
    scf.if %11 {
      %c0_8 = arith.constant 0 : index
      %c0_9 = arith.constant 0 : index
      %15 = vector.load %arg5[%c0_8, %c0_9] : memref<8x128xf32, #tpu.memory_space<vmem>>, vector<8x128xf32>
      %16 = vector.shape_cast %8 : vector<16x128xf32> to vector<2x8x128xf32>
      %cst = arith.constant dense<0.000000e+00> : vector<8x128xf32>
      %17 = vector.multi_reduction <add>, %16, %cst [0] : vector<2x8x128xf32> to vector<8x128xf32>
      %18 = arith.addf %15, %17 : vector<8x128xf32>
      %c0_10 = arith.constant 0 : index
      %c0_11 = arith.constant 0 : index
      %19 = vector.load %arg5[%c0_10, %c0_11] : memref<8x128xf32, #tpu.memory_space<vmem>>, vector<8x128xf32>
      tpu.vector_store %arg5[%c0_10, %c0_11], %18 {strides = array<i32>} : memref<8x128xf32, #tpu.memory_space<vmem>>, vector<8x128xf32>,
    } else {
    }
    %c0_i32_6 = arith.constant 0 : i32
    %12 = arith.cmpi eq, %arg1, %c0_i32_6 : i32
    %13 = arith.extui %12 : i1 to i32
    %c0_i32_7 = arith.constant 0 : i32
    %14 = arith.cmpi ne, %13, %c0_i32_7 : i32
    scf.if %14 {
      %c0_8 = arith.constant 0 : index
      %c0_9 = arith.constant 0 : index
      %15 = vector.load %arg5[%c0_8, %c0_9] : memref<8x128xf32, #tpu.memory_space<vmem>>, vector<8x128xf32>
      %16 = vector.shape_cast %15 : vector<8x128xf32> to vector<1x8x128xf32>
      %c0_10 = arith.constant 0 : index
      %c0_11 = arith.constant 0 : index
      %c0_12 = arith.constant 0 : index
      %17 = vector.load %arg4[%c0_10, %c0_11, %c0_12] : memref<1x8x128xf32, #tpu.memory_space<vmem>>, vector<1x8x128xf32>
      tpu.vector_store %arg4[%c0_10, %c0_11, %c0_12], %16 {strides = array<i32>} : memref<1x8x128xf32, #tpu.memory_space<vmem>>, vector<1x8x128xf32>,
    } else {
    }
    return
  }
  func.func @transform_0(%arg0: i32, %arg1: i32) -> (i32, i32) {
    %c2_i32 = arith.constant 2 : i32
    %0 = arith.muli %c2_i32, %arg1 : i32
    %1 = arith.addi %0, %arg0 : i32
    %c0_i32 = arith.constant 0 : i32
    %2 = arith.minsi %1, %c0_i32 : i32
    %c0_i32_0 = arith.constant 0 : i32
    %c0_i32_1 = arith.constant 0 : i32
    return %2, %c0_i32_0 : i32, i32
  }
  func.func @transform_1(%arg0: i32, %arg1: i32) -> (i32, i32) {
    %c2_i32 = arith.constant 2 : i32
    %0 = arith.muli %c2_i32, %arg1 : i32
    %1 = arith.addi %0, %arg0 : i32
    %c0_i32 = arith.constant 0 : i32
    %2 = arith.minsi %1, %c0_i32 : i32
    %c0_i32_0 = arith.constant 0 : i32
    %c0_i32_1 = arith.constant 0 : i32
    return %2, %c0_i32_0 : i32, i32
  }
  func.func @transform_2(%arg0: i32, %arg1: i32) -> (i32, i32, i32) {
    %c0_i32 = arith.constant 0 : i32
    %c0_i32_0 = arith.constant 0 : i32
    %c0_i32_1 = arith.constant 0 : i32
    return %arg0, %c0_i32, %c0_i32_0 : i32, i32, i32
  }
}

</mosaic_0001>

<llo_original>
// kernel: tpu_custom_call.1
$region0: #{tpu_custom_call.1}
  #allocation0 [shape = 'u32[]', space=smem, size = 0x4, offset = 0x4, fixed_abs, tag = 'smem constant byte address 0x4 - core index']
  #allocation1 [shape = 'u32[144,128]{1,0:T(1,128)}', space=vmem, size = 0x12000, scoped, tag = 'internal scratch']
  #allocation2 [shape = 'f32[8,128]{1,0:T(8,128)}', space=vmem, size = 0x1000, scoped, tag = 'scratch operand']
  %s0 = inlined_call_operand.hbm [shape: f32[16,128], index: 0, kind: input, shape index: {}]
  %s1 = inlined_call_operand.hbm [shape: f32[16,128], index: 1, kind: input, shape index: {}]
  %s2 = inlined_call_operand.hbm [shape: f32[2,8,128], index: 2, kind: output, shape index: {}]
  %s3 = sld [smem:[#allocation0]]
  $region61: #{tpu_custom_call.1} parent=0
    _
  %s5 = ssub.s32 1, %s3
  %s6 = scalar_select 0, %s5, %s3
  $region1: #{tpu_custom_call.1} parent=0
    #allocation3 [shape = 'u8[16384]{0}', space=vmem, size = 0x4000, scoped, tag = 'input window, operand 0']
    #allocation4 [shape = 's32[2]{0}', space=sflag, size = 0x8, scoped, tag = 'scoped memory for tpu_custom_call.1']
    #allocation5 [shape = 's32[2]{0}', space=sflag, size = 0x8, scoped, tag = 'scoped memory for tpu_custom_call.1']
    #allocation6 [shape = 'u8[16384]{0}', space=vmem, size = 0x4000, scoped, tag = 'input window, operand 1']
    #allocation7 [shape = 's32[2]{0}', space=sflag, size = 0x8, scoped, tag = 'scoped memory for tpu_custom_call.1']
    #allocation8 [shape = 'u8[8192]{0}', space=vmem, size = 0x2000, scoped, tag = 'output window, operand 0']
    %7 = vsyncpa [#allocation4], 0
    %s8 = scalar_lea.sflag [#allocation4], 1
    %9 = vsyncpa %s8, 0
    %10 = vsyncpa [#allocation7], 0
    %s11 = scalar_lea.sflag [#allocation7], 1
    %12 = vsyncpa %s11, 0
    %13 = vsyncpa [#allocation5], 0
    %s14 = scalar_lea.sflag [#allocation5], 1
    %15 = vsyncpa %s14, 0
    loop: start=0, step=1, limit=4
    $region2: #{tpu_custom_call.1} parent=1 // loop_pre_header
      _
    $region3: #{tpu_custom_call.1} parent=1 // loop_header
      %s17 = sphi 0, %s21
      %p18 = scmp.ge.s32.totalorder %s17, 4
      %s24 = sphi 0, %s36
      %s25 = sphi 0, %s32
      %s26 = sphi 0, %s24
      %s27 = sphi 0, %s25
      %s28 = sphi 0, %s26
      %s29 = sphi 0, %s27
      %s47 = sphi 0, %s49
      %s50 = sphi 0, %s47
      %s51 = sphi 0, %s50
      %s67 = sphi 0, %s51
      %s81 = sphi 0, %s83
      %s84 = sphi 0, %s81
      %s85 = sphi 0, %s84
      %s101 = sphi 0, %s85
      %s107 = sphi 0, %s109
      %s110 = sphi 0, %s107
      %s111 = sphi 0, %s110
      %s127 = sphi 0, %s111
    $region4: #{tpu_custom_call.1} parent=1 // loop_header_branch
      %20 = sbr.rel (%p18) target = $region8
    $region5: #{tpu_custom_call.1} parent=1 // loop_body
      %s22 = ssub.s32 %s17, 1
      %s23 = ssub.s32 %s17, 2
      %s30 = sadd.s32 1, %s25
      %p31 = scmp.ge.s32.totalorder %s30, 1
      %s32 = scalar_select %p31, 0, %s30
      %s33 = sadd.s32 1, %s24
      %s34 = scalar_select %p31, %s33, %s24
      %p35 = scmp.ge.s32.totalorder %s34, 2
      %s36 = scalar_select %p35, 0, %s34
      %s37 = smul.u32 %s25, 2
      %s38 = sadd.s32 %s37, %s24
      %p39 = scmp.lt.s32.totalorder %s38, 0
      %s40 = scalar_select %p39, %s38, 0
      %s41 = smul.u32 %s32, 2
      %s42 = sadd.s32 %s41, %s36
      %p43 = scmp.lt.s32.totalorder %s42, 0
      %s44 = scalar_select %p43, %s42, 0
      %s45 = ssub.s32 %s40, %s44
      %p46 = scmp.eq.s32.totalorder %s45, 0
      %s48 = sadd.s32 %s47, 1
      %s49 = scalar_select %p46, %s47, %s48
      %p52 = pneg %p46
      %p53 = scmp.eq.s32.totalorder %s17, 1
      %p54 = por %p52, %p53
      %p55 = scmp.ne.s32.totalorder %s47, %s50
      %p56 = scmp.eq.s32.totalorder %s17, 0
      %p57 = por %p55, %p56
      %p58 = scmp.ne.s32.totalorder %s47, %s50
      %p59 = scmp.eq.s32.totalorder %s22, 1
      %p60 = por %p58, %p59
      %p61 = scmp.ne.s32.totalorder %s50, %s51
      %p62 = scmp.eq.s32.totalorder %s22, 0
      %p63 = por %p61, %p62
      %p64 = scmp.ne.s32.totalorder %s50, %s51
      %p65 = scmp.eq.s32.totalorder %s23, 1
      %p66 = por %p64, %p65
      %p68 = scmp.ne.s32.totalorder %s51, %s67
      %p69 = scmp.eq.s32.totalorder %s23, 0
      %p70 = por %p68, %p69
      %s71 = smul.u32 %s25, 2
      %s72 = sadd.s32 %s71, %s24
      %p73 = scmp.lt.s32.totalorder %s72, 0
      %s74 = scalar_select %p73, %s72, 0
      %s75 = smul.u32 %s32, 2
      %s76 = sadd.s32 %s75, %s36
      %p77 = scmp.lt.s32.totalorder %s76, 0
      %s78 = scalar_select %p77, %s76, 0
      %s79 = ssub.s32 %s74, %s78
      %p80 = scmp.eq.s32.totalorder %s79, 0
      %s82 = sadd.s32 %s81, 1
      %s83 = scalar_select %p80, %s81, %s82
      %p86 = pneg %p80
      %p87 = scmp.eq.s32.totalorder %s17, 1
      %p88 = por %p86, %p87
      %p89 = scmp.ne.s32.totalorder %s81, %s84
      %p90 = scmp.eq.s32.totalorder %s17, 0
      %p91 = por %p89, %p90
      %p92 = scmp.ne.s32.totalorder %s81, %s84
      %p93 = scmp.eq.s32.totalorder %s22, 1
      %p94 = por %p92, %p93
      %p95 = scmp.ne.s32.totalorder %s84, %s85
      %p96 = scmp.eq.s32.totalorder %s22, 0
      %p97 = por %p95, %p96
      %p98 = scmp.ne.s32.totalorder %s84, %s85
      %p99 = scmp.eq.s32.totalorder %s23, 1
      %p100 = por %p98, %p99
      %p102 = scmp.ne.s32.totalorder %s85, %s101
      %p103 = scmp.eq.s32.totalorder %s23, 0
      %p104 = por %p102, %p103
      %s105 = ssub.s32 %s24, %s36
      %p106 = scmp.eq.s32.totalorder %s105, 0
      %s108 = sadd.s32 %s107, 1
      %s109 = scalar_select %p106, %s107, %s108
      %p112 = pneg %p106
      %p113 = scmp.eq.s32.totalorder %s17, 1
      %p114 = por %p112, %p113
      %p115 = scmp.ne.s32.totalorder %s107, %s110
      %p116 = scmp.eq.s32.totalorder %s17, 0
      %p117 = por %p115, %p116
      %p118 = scmp.ne.s32.totalorder %s107, %s110
      %p119 = scmp.eq.s32.totalorder %s22, 1
      %p120 = por %p118, %p119
      %p121 = scmp.ne.s32.totalorder %s110, %s111
      %p122 = scmp.eq.s32.totalorder %s22, 0
      %p123 = por %p121, %p122
      %p124 = scmp.ne.s32.totalorder %s110, %s111
      %p125 = scmp.eq.s32.totalorder %s23, 1
      %p126 = por %p124, %p125
      %p128 = scmp.ne.s32.totalorder %s111, %s127
      %p129 = scmp.eq.s32.totalorder %s23, 0
      %p130 = por %p128, %p129
      %p131 = scmp.le.s32.totalorder 1, %s17
      %p132 = scmp.lt.s32.totalorder %s17, 3
      %p133 = pnand %p131, %p132
      %p134 = pneg %p133
      // Predicated region
      $region9: #{tpu_custom_call.1} parent=5 // pred_check
        _
      $region10: #{tpu_custom_call.1} parent=5 // pred_check_branch
        %136 = sbr.rel (%p133) target = $region12
      $region11: #{tpu_custom_call.1} parent=5 // pred_region
        %s137 = ssub.s32 %s17, 1
      $region12: #{tpu_custom_call.1} parent=5 // pred_fallthru
        _
      %p138 = scmp.lt.s32.totalorder %s17, 2
      // Predicated region
      $region13: #{tpu_custom_call.1} parent=5 // pred_check
        %p139 = pneg %p138
      $region14: #{tpu_custom_call.1} parent=5 // pred_check_branch
        %141 = sbr.rel (%p139) target = $region16
      $region15: #{tpu_custom_call.1} parent=5 // pred_region
        // Predicated region
        $region17: #{tpu_custom_call.1} parent=15 // pred_check
          %p142 = pneg %p57
        $region18: #{tpu_custom_call.1} parent=15 // pred_check_branch
          %144 = sbr.rel (%p142) target = $region20
        $region19: #{tpu_custom_call.1} parent=15 // pred_region
          %s145 = sand.u32 %s47, 1
          %s146 = scalar_lea.sflag [#allocation4], %s145
          %s147 = sand.u32 %s47, 1
          %s148 = smul.addr %s147, 16
          %s149 = scalar_lea.vmem [#allocation3], %s148
          %s150 = smul.u32 %s25, 2
          %s151 = sadd.s32 %s150, %s24
          %p152 = scmp.lt.s32.totalorder %s151, 0
          %s153 = scalar_select %p152, %s151, 0
          %s154 = smul.u32 2, %s153
          %s156 = ssub.s32 256, 256
          %157 = vsyncadd %s146, %s156
          %s158 = smul.addr %s154, 128
          %s159 = scalar_lea.hbm %s0, %s158
          %s160 = sshll.u32 %s149, 4
          %s161 = int_to_ptr.vmem [resolvable:$true] %s160
          %166 = dma.hbm_to_vmem [thread:$0]  %s159, 256, %s161, %s146, 128, 128, 8
        $region20: #{tpu_custom_call.1} parent=15 // pred_fallthru
          _
        // Predicated region
        $region21: #{tpu_custom_call.1} parent=15 // pred_check
          %p167 = pneg %p91
        $region22: #{tpu_custom_call.1} parent=15 // pred_check_branch
          %169 = sbr.rel (%p167) target = $region24
        $region23: #{tpu_custom_call.1} parent=15 // pred_region
          %s170 = sand.u32 %s81, 1
          %s171 = scalar_lea.sflag [#allocation7], %s170
          %s172 = sand.u32 %s81, 1
          %s173 = smul.addr %s172, 16
          %s174 = scalar_lea.vmem [#allocation6], %s173
          %s175 = smul.u32 %s25, 2
          %s176 = sadd.s32 %s175, %s24
          %p177 = scmp.lt.s32.totalorder %s176, 0
          %s178 = scalar_select %p177, %s176, 0
          %s179 = smul.u32 2, %s178
          %s181 = ssub.s32 256, 256
          %182 = vsyncadd %s171, %s181
          %s183 = smul.addr %s179, 128
          %s184 = scalar_lea.hbm %s1, %s183
          %s185 = sshll.u32 %s174, 4
          %s186 = int_to_ptr.vmem [resolvable:$true] %s185
          %191 = dma.hbm_to_vmem [thread:$0]  %s184, 256, %s186, %s171, 128, 128, 8
        $region24: #{tpu_custom_call.1} parent=15 // pred_fallthru
          _
      $region16: #{tpu_custom_call.1} parent=5 // pred_fallthru
        _
      %p192 = scmp.le.s32.totalorder 1, %s17
      %p193 = scmp.lt.s32.totalorder %s17, 3
      %p194 = pnand %p192, %p193
      %p195 = pneg %p194
      // Predicated region
      $region25: #{tpu_custom_call.1} parent=5 // pred_check
        _
      $region26: #{tpu_custom_call.1} parent=5 // pred_check_branch
        %197 = sbr.rel (%p194) target = $region28
      $region27: #{tpu_custom_call.1} parent=5 // pred_region
        %s198 = ssub.s32 %s17, 1
        %s199 = sand.u32 %s50, 1
        %s200 = scalar_lea.sflag [#allocation4], %s199
        %s201 = sand.u32 %s50, 1
        %s202 = smul.addr %s201, 16
        %s203 = scalar_lea.vmem [#allocation3], %s202
        // Predicated region
        $region29: #{tpu_custom_call.1} parent=27 // pred_check
          %p204 = pneg %p63
        $region30: #{tpu_custom_call.1} parent=27 // pred_check_branch
          %206 = sbr.rel (%p204) target = $region32
        $region31: #{tpu_custom_call.1} parent=27 // pred_region
          %207 = dma.done %s200, 256
        $region32: #{tpu_custom_call.1} parent=27 // pred_fallthru
          _
        %s208 = sand.u32 %s84, 1
        %s209 = scalar_lea.sflag [#allocation7], %s208
        %s210 = sand.u32 %s84, 1
        %s211 = smul.addr %s210, 16
        %s212 = scalar_lea.vmem [#allocation6], %s211
        // Predicated region
        $region33: #{tpu_custom_call.1} parent=27 // pred_check
          %p213 = pneg %p97
        $region34: #{tpu_custom_call.1} parent=27 // pred_check_branch
          %215 = sbr.rel (%p213) target = $region36
        $region35: #{tpu_custom_call.1} parent=27 // pred_region
          %216 = dma.done %s209, 256
        $region36: #{tpu_custom_call.1} parent=27 // pred_fallthru
          _
        %s217 = sand.u32 %s50, 1
        %s218 = scalar_lea.sflag [#allocation4], %s217
        %s219 = sand.u32 %s50, 1
        %s220 = smul.addr %s219, 16
        %s221 = scalar_lea.vmem [#allocation3], %s220
        %p222 = pneg %p63
        %p223 = pneg %p60
        %s224 = sand.u32 %s84, 1
        %s225 = scalar_lea.sflag [#allocation7], %s224
        %s226 = sand.u32 %s84, 1
        %s227 = smul.addr %s226, 16
        %s228 = scalar_lea.vmem [#allocation6], %s227
        %p229 = pneg %p97
        %p230 = pneg %p94
        %p231 = pneg %p123
        %p232 = pneg %p120
        %s233 = sand.u32 %s110, 1
        %s234 = scalar_lea.sflag [#allocation5], %s233
        %s235 = sand.u32 %s110, 1
        %s236 = smul.addr %s235, 8
        %s237 = scalar_lea.vmem [#allocation8], %s236
        %s238 = smul.u32 %s27, 2
        %s239 = sadd.s32 %s238, %s26
        %p240 = scmp.lt.s32.totalorder %s239, 0
        %s241 = scalar_select %p240, %s239, 0
        %s242 = smul.u32 2, %s241
        %s243 = smul.u32 %s27, 2
        %s244 = sadd.s32 %s243, %s26
        %p245 = scmp.lt.s32.totalorder %s244, 0
        %s246 = scalar_select %p245, %s244, 0
        %s247 = smul.u32 2, %s246
        %s248 = smul.u32 %s27, 2
        %s249 = sadd.s32 %s248, %s26
        %p250 = scmp.eq.s32.totalorder %s27, 0
        // Predicated region
        $region37: #{tpu_custom_call.1} parent=27 // pred_check
          %p251 = pneg %p250
        $region38: #{tpu_custom_call.1} parent=27 // pred_check_branch
          %253 = sbr.rel (%p251) target = $region40
        $region39: #{tpu_custom_call.1} parent=27 // pred_region
          %254 = vst [vmem:[#allocation2] sm:$0xff] 0.0
        $region40: #{tpu_custom_call.1} parent=27 // pred_fallthru
          _
        %v255 = vld [vmem:[%s203] sm:$0xff]
        %v256 = vld [vmem:[%s203 + $0x8] sm:$0xff]
        %v257 = vld [vmem:[%s212] sm:$0xff]
        %v258 = vld [vmem:[%s212 + $0x8] sm:$0xff]
        %v259 = vsub.f32 %v255, %v257
        %v260 = vsub.f32 %v256, %v258
        %v261 = vmul.f32 %v259, %v259
        %v262 = vmul.f32 %v260, %v260
        %p263 = scmp.le.s32.totalorder %s249, 0
        // Predicated region
        $region41: #{tpu_custom_call.1} parent=27 // pred_check
          %p264 = pneg %p263
        $region42: #{tpu_custom_call.1} parent=27 // pred_check_branch
          %266 = sbr.rel (%p264) target = $region44
        $region43: #{tpu_custom_call.1} parent=27 // pred_region
          %v267 = vld [vmem:[#allocation2] sm:$0xff]
          %v268 = vadd.f32 %v261, %v262
          %v269 = vadd.f32 %v267, %v268
          %270 = vst [vmem:[#allocation2] sm:$0xff] %v269
        $region44: #{tpu_custom_call.1} parent=27 // pred_fallthru
          _
        // Predicated region
        $region45: #{tpu_custom_call.1} parent=27 // pred_check
          %p271 = pneg %p250
        $region46: #{tpu_custom_call.1} parent=27 // pred_check_branch
          %273 = sbr.rel (%p271) target = $region48
        $region47: #{tpu_custom_call.1} parent=27 // pred_region
          %v274 = vld [vmem:[#allocation2] sm:$0xff]
          %275 = vst [vmem:[%s237] sm:$0xff] %v274
        $region48: #{tpu_custom_call.1} parent=27 // pred_fallthru
          _
        %s276 = sand.u32 %s110, 1
        %s277 = scalar_lea.sflag [#allocation5], %s276
        %s278 = sand.u32 %s110, 1
        %s279 = smul.addr %s278, 8
        %s280 = scalar_lea.vmem [#allocation8], %s279
        // Predicated region
        $region49: #{tpu_custom_call.1} parent=27 // pred_check
          %p281 = pneg %p120
        $region50: #{tpu_custom_call.1} parent=27 // pred_check_branch
          %283 = sbr.rel (%p281) target = $region52
        $region51: #{tpu_custom_call.1} parent=27 // pred_region
          %s285 = ssub.s32 128, 128
          %286 = vsyncadd %s277, %s285
          %s287 = smul.addr %s26, 128
          %s288 = scalar_lea.hbm %s2, %s287
          %s290 = sshll.u32 %s280, 4
          %s291 = int_to_ptr.vmem [resolvable:$true] %s290
          %293 = dma.vmem_to_hbm [thread:$0]  %s291, 128, %s288, %s277
        $region52: #{tpu_custom_call.1} parent=27 // pred_fallthru
          _
      $region28: #{tpu_custom_call.1} parent=5 // pred_fallthru
        _
      %p294 = scmp.le.s32.totalorder 2, %s17
      // Predicated region
      $region53: #{tpu_custom_call.1} parent=5 // pred_check
        %p295 = pneg %p294
      $region54: #{tpu_custom_call.1} parent=5 // pred_check_branch
        %297 = sbr.rel (%p295) target = $region56
      $region55: #{tpu_custom_call.1} parent=5 // pred_region
        %s298 = ssub.s32 %s17, 2
        // Predicated region
        $region57: #{tpu_custom_call.1} parent=55 // pred_check
          %p299 = pneg %p126
        $region58: #{tpu_custom_call.1} parent=55 // pred_check_branch
          %301 = sbr.rel (%p299) target = $region60
        $region59: #{tpu_custom_call.1} parent=55 // pred_region
          %s302 = sand.u32 %s111, 1
          %s303 = scalar_lea.sflag [#allocation5], %s302
          %s304 = sand.u32 %s111, 1
          %s305 = smul.addr %s304, 8
          %s306 = scalar_lea.vmem [#allocation8], %s305
          %307 = dma.done %s303, 128
        $region60: #{tpu_custom_call.1} parent=55 // pred_fallthru
          _
      $region56: #{tpu_custom_call.1} parent=5 // pred_fallthru
        _
    $region6: #{tpu_custom_call.1} parent=1 // loop_footer
      %s21 = sadd.s32 1, %s17
    $region7: #{tpu_custom_call.1} parent=1 // loop_footer_branch
      %16 = sbr.rel target = $region3
    $region8: #{tpu_custom_call.1} parent=1 // loop_exit
      _
    %308 = vsyncpa [#allocation4], 1
    %s309 = scalar_lea.sflag [#allocation4], 1
    %310 = vsyncpa %s309, 1
    %311 = vsyncpa [#allocation7], 1
    %s312 = scalar_lea.sflag [#allocation7], 1
    %313 = vsyncpa %s312, 1
    %314 = vsyncpa [#allocation5], 1
    %s315 = scalar_lea.sflag [#allocation5], 1
    %316 = vsyncpa %s315, 1

</llo_original>
